<compile_context>
chip_gen: v7x
topology: tpu7x:2x2x1
jax: 0.10.0
libtpu: 0.0.40
codegen_flags: <defaults>
</compile_context>

<pallas_src>
import functools

import jax
import jax.numpy as jnp
import numpy as np
from jax.experimental import pallas as pl
from jax.experimental.pallas import tpu as pltpu

NUM_LAYERS = 2
D_MODEL = 128
N_HEADS = 4
HEAD_DIM = D_MODEL // N_HEADS
FF_DIM = 256
EMBED = 8  # forward semantics require 8 (two 4-channel halves)


# --------------------------------------------------------------------------------------
# Kernel 1: gated conv (one fused or two channel-split bf16 MXU matmuls), bf16 sigmoid
#           gating, and global max pool accumulated directly into the resident output block.
# Grid: (n_split, B, T_tiles).  n_split/B "parallel" (megacore), T "arbitrary" (reduction).
# --------------------------------------------------------------------------------------
def gated_conv_pool_kernel(*refs, split, t_valid, t_tile, n_t, n_tiles, masked):
    if split:
        x1_ref, x2_ref, w1_ref, w2_ref, b_ref, o_ref = refs
    else:
        x_ref, w_ref, b_ref, o_ref = refs
    s = pl.program_id(0)
    t = pl.program_id(2)

    # o_ref block index is constant across t -> it stays VMEM-resident; init once per (s, b).
    @pl.when(t == 0)
    def _():
        o_ref[0, 0] = jnp.full((1, D_MODEL), -jnp.inf, jnp.float32)

    if split:
        # W >= 32: dense-K matmuls (no structurally-zero blocks) -> half the MXU FLOPs.
        cnn = (jnp.dot(x1_ref[0], w1_ref[...], preferred_element_type=jnp.float32)
               + b_ref[:, :D_MODEL])
        pre = (jnp.dot(x2_ref[0], w2_ref[...], preferred_element_type=jnp.float32)
               + b_ref[:, D_MODEL:])
    else:
        # small W: one lane-dense slab drives a single (t_tile, W*8) @ (W*8, 256) matmul.
        g = (jnp.dot(x_ref[0], w_ref[...], preferred_element_type=jnp.float32)
             + b_ref[...])
        cnn, pre = g[:, :D_MODEL], g[:, D_MODEL:]

    # bf16 sigmoid: bf16 EUP path on v6e/v7x (upcast on v5e); mirrored in the reference.
    gate = jax.nn.sigmoid(pre.astype(jnp.bfloat16)).astype(jnp.float32)
    val = cnn * gate                                                 # (t_tile, 128) f32

    def accum(v):
        o_ref[0, 0] = jnp.maximum(o_ref[0, 0], jnp.max(v, axis=0, keepdims=True))

    if masked:
        glob = s * n_t + t
        ragged = glob == n_tiles - 1  # only the globally-last tile can contain pad/OOB rows

        @pl.when(ragged)
        def _():
            row = glob * t_tile + jax.lax.broadcasted_iota(jnp.int32, (t_tile, 1), 0)
            accum(jnp.where(row < t_valid, val, -jnp.inf))

        @pl.when(jnp.logical_not(ragged))
        def _():
            accum(val)
    else:
        accum(val)


def _choose_t_tile(t, window):
    # ~2 MiB of bf16 window rows per tile (HBM-roofline friendly) but capped so the
    # (t_tile, 256) f32 matmul output stays <= 2 MiB.  With double-buffered inputs this sits
    # well under the explicit 32 MiB VMEM limit (safe on v7x's 64 MiB physical VMEM).
    bytes_per_row = window * EMBED * 2
    tt = max(8, (2 * 1024 * 1024) // bytes_per_row)
    tt = min(tt, 2048)
    tt = min(tt, ((t + 7) // 8) * 8)        # no bigger than (rounded-up) T
    return max(8, (tt // 8) * 8)


def gated_conv_pool(xs, ws, b_fused, t_valid, t_tile):
    # xs: 1 (fused) or 2 (channel-split) window slabs (B, T, K); ws: matching (K, 128/256).
    B, T, _ = xs[0].shape
    n_tiles = pl.cdiv(T, t_tile)
    # Give v7x's second TensorCore work when there is no batch parallelism.
    n_split = 2 if (B == 1 and n_tiles >= 2 and n_tiles % 2 == 0) else 1
    n_t = n_tiles // n_split
    masked = (T % t_tile) != 0

    kernel = functools.partial(
        gated_conv_pool_kernel, split=(len(xs) == 2), t_valid=t_valid,
        t_tile=t_tile, n_t=n_t, n_tiles=n_tiles, masked=masked)

    x_specs = [pl.BlockSpec((1, t_tile, x.shape[2]), lambda s, b, t: (b, s * n_t + t, 0))
               for x in xs]
    w_specs = [pl.BlockSpec(w.shape, lambda s, b, t: (0, 0)) for w in ws]
    b_spec = pl.BlockSpec(b_fused.shape, lambda s, b, t: (0, 0))

    out = pl.pallas_call(
        kernel,
        out_shape=jax.ShapeDtypeStruct((n_split, B, 1, D_MODEL), jnp.float32),
        grid=(n_split, B, n_t),
        in_specs=x_specs + w_specs + [b_spec],
        out_specs=pl.BlockSpec((1, 1, 1, D_MODEL), lambda s, b, t: (s, b, 0, 0)),
        compiler_params=pltpu.CompilerParams(
            dimension_semantics=("parallel", "parallel", "arbitrary"),
            vmem_limit_bytes=32 * 1024 * 1024),
    )(*xs, *ws, b_fused)

    pooled = out[:, :, 0, :]                         # (n_split, B, 128) partial maxes
    return jnp.max(pooled, axis=0) if n_split > 1 else pooled[0]


# --------------------------------------------------------------------------------------
# Kernel 2: 2-layer post-norm TransformerEncoder (MHA + FFN) + fc_1 + fc_2.
# No grid: every operand is a whole-array VMEM resident.  Heads run as leading-batch
# dot_generals on pre-stacked (H, D, Dh)/(H, Dh, D) bf16 weights (no stack/concat/slice of
# the lane dim).  Output is a lane-dense (S, 128) slab; column 0 is the logit.
# --------------------------------------------------------------------------------------
def transformer_head_kernel(
    x_ref, wq_ref, bq_ref, wk_ref, bk_ref, wv_ref, bv_ref, wo_ref, bo_ref,
    ln1w_ref, ln1b_ref, l1w_ref, l1b_ref, l2w_ref, l2b_ref, ln2w_ref, ln2b_ref,
    fc1w_ref, fc1b_ref, fc2w_ref, fc2b_ref, o_ref,
):
    f32, bf16 = jnp.float32, jnp.bfloat16
    x = x_ref[...]                                   # (S, 128) f32
    S = x.shape[0]
    scale = 1.0 / (HEAD_DIM ** 0.5)

    def bdot(a, b):                                   # leading-batch (H, ...) matmul
        return jax.lax.dot_general(a, b, (((2,), (1,)), ((0,), (0,))),
                                   preferred_element_type=f32)

    def layernorm(z, w, b):
        mu = jnp.mean(z, axis=-1, keepdims=True)
        var = jnp.mean((z - mu) ** 2, axis=-1, keepdims=True)
        return (z - mu) * jax.lax.rsqrt(var + 1e-5) * w + b

    for l in range(NUM_LAYERS):
        # --- MultiheadAttention (self-attn, no mask); bf16 MXU operands, f32 accumulation ---
        xh = jnp.broadcast_to(x.astype(bf16), (N_HEADS, S, D_MODEL))     # (H, S, D) bf16
        q = bdot(xh, wq_ref[l]) + bq_ref[l]                              # (H, S, Dh) f32
        k = bdot(xh, wk_ref[l]) + bk_ref[l]
        v = bdot(xh, wv_ref[l]) + bv_ref[l]
        s_att = jax.lax.dot_general(q, k, (((2,), (2,)), ((0,), (0,))),
                                    preferred_element_type=f32) * scale  # (H, S, S)
        s_att = s_att - jnp.max(s_att, axis=-1, keepdims=True)
        p = jnp.exp(s_att)
        p = p / jnp.sum(p, axis=-1, keepdims=True)    # exact divide (tiny tensor)
        ctx = bdot(p, v)                                                 # (H, S, Dh) f32
        # fold the head-concat into the per-head-stacked output projection and sum over H
        attn = jnp.sum(bdot(ctx.astype(bf16), wo_ref[l]), axis=0) + bo_ref[l]   # (S, D)
        x = layernorm(x + attn, ln1w_ref[l], ln1b_ref[l])
        # --- FFN (relu) ---
        ff = jnp.maximum(
            jnp.dot(x.astype(bf16), l1w_ref[l], preferred_element_type=f32) + l1b_ref[l], 0.0)
        ff = jnp.dot(ff.astype(bf16), l2w_ref[l], preferred_element_type=f32) + l2b_ref[l]
        x = layernorm(x + ff, ln2w_ref[l], ln2b_ref[l])

    # fc_1 (no activation), then fc_2 (out_features=1, done as a lane reduction)
    y = jnp.dot(x.astype(bf16), fc1w_ref[...], preferred_element_type=f32) + fc1b_ref[...]
    logit = jnp.sum(y * fc2w_ref[...], axis=-1, keepdims=True) + fc2b_ref[...]   # (S, 1)
    # lane-dense store: broadcast the scalar logit across 128 lanes (unmasked vst)
    o_ref[...] = jnp.broadcast_to(logit, o_ref.shape)


def transformer_head(x, tr):
    args = (x,) + tuple(tr)
    return pl.pallas_call(
        transformer_head_kernel,
        out_shape=jax.ShapeDtypeStruct((x.shape[0], D_MODEL), jnp.float32),
        in_specs=[pl.BlockSpec(memory_space=pltpu.MemorySpace.VMEM) for _ in args],
        out_specs=pl.BlockSpec(memory_space=pltpu.MemorySpace.VMEM),
    )(*args)


# --------------------------------------------------------------------------------------
# Full forward (glue: embedding gather + free window reshape; no padding copies)
# --------------------------------------------------------------------------------------
def maltf_forward(tokens, params, t_tile=None):
    W = params["window"]
    B, L = tokens.shape
    T = L // W
    assert T >= 1, "need at least one full window per sequence"
    if t_tile is None:
        t_tile = _choose_t_tile(T, W)
    tok = tokens[:, :T * W]                 # Conv1d floor: drop tokens past the last window
    if W >= 32:
        # channel-split slabs (gathered straight from the half-tables): dense-K matmuls,
        # no structurally-zero weight blocks, same HBM bytes as the fused slab.
        x1 = params["embed"][:, :4][tok].reshape(B, T, W * 4)
        x2 = params["embed"][:, 4:][tok].reshape(B, T, W * 4)
        xs, ws = (x1, x2), (params["w_cnn"], params["w_gate"])
    else:
        # small windows: one fused slab keeps the x block lane-dense (W*8 lanes)
        xs = (params["embed"][tok].reshape(B, T, W * EMBED),)
        ws = (params["w_fused"],)
    pooled = gated_conv_pool(xs, ws, params["b_fused"], T, t_tile)   # (B, 128)
    # (B, 1, 128) fed to TransformerEncoder with (seq, batch, d) convention -> (S=B, D=128)
    out = transformer_head(pooled, params["tr"])                     # (B, 128) lane-dense
    return out[:, :1]                                                # (B, 1) logits


# --------------------------------------------------------------------------------------
# Pure-JAX reference (same math, same bf16/f32 precision decisions, same parameters)
# --------------------------------------------------------------------------------------
def reference_forward(tokens, params):
    W = params["window"]
    B, L = tokens.shape
    T = L // W
    xw = params["embed"][tokens[:, :T * W]].reshape(B, T, W * EMBED)
    g = jnp.dot(xw, params["w_fused"], preferred_element_type=jnp.float32) + params["b_fused"]
    cnn = g[..., :D_MODEL]
    gate = jax.nn.sigmoid(g[..., D_MODEL:].astype(jnp.bfloat16)).astype(jnp.float32)
    x = jnp.max(cnn * gate, axis=1)                                  # (B, 128)

    (wq, bq, wk, bk, wv, bv, wo, bo, ln1w, ln1b, l1w, l1b, l2w, l2b,
     ln2w, ln2b, fc1w, fc1b, fc2w, fc2b) = params["tr"]
    f32, bf16 = jnp.float32, jnp.bfloat16
    hi = jax.lax.Precision.HIGHEST

    def layernorm(z, w, b):
        mu = jnp.mean(z, axis=-1, keepdims=True)
        var = jnp.mean((z - mu) ** 2, axis=-1, keepdims=True)
        return (z - mu) * jax.lax.rsqrt(var + 1e-5) * w + b

    scale = 1.0 / (HEAD_DIM ** 0.5)
    for l in range(NUM_LAYERS):
        xb = x.astype(bf16)
        q = jnp.einsum("sd,hde->hse", xb, wq[l], preferred_element_type=f32) + bq[l]
        k = jnp.einsum("sd,hde->hse", xb, wk[l], preferred_element_type=f32) + bk[l]
        v = jnp.einsum("sd,hde->hse", xb, wv[l], preferred_element_type=f32) + bv[l]
        s = jnp.einsum("hse,hte->hst", q, k, precision=hi) * scale
        p = jax.nn.softmax(s, axis=-1)
        ctx = jnp.einsum("hst,hte->hse", p, v, precision=hi)
        attn = jnp.einsum("hse,hed->sd", ctx.astype(bf16), wo[l],
                          preferred_element_type=f32) + bo[l]
        x = layernorm(x + attn, ln1w[l], ln1b[l])
        ff = jnp.maximum(jnp.einsum("sd,df->sf", x.astype(bf16), l1w[l],
                                    preferred_element_type=f32) + l1b[l], 0.0)
        ff = jnp.einsum("sf,fd->sd", ff.astype(bf16), l2w[l],
                        preferred_element_type=f32) + l2b[l]
        x = layernorm(x + ff, ln2w[l], ln2b[l])
    y = jnp.dot(x.astype(bf16), fc1w, preferred_element_type=f32) + fc1b
    return jnp.sum(y * fc2w, axis=-1, keepdims=True) + fc2b


# --------------------------------------------------------------------------------------
# Deterministic parameter init (synthetic, matches module shapes; torch layouts transformed)
# --------------------------------------------------------------------------------------
def init_params(key, window):
    ks = jax.random.split(key, 8)
    bf16 = jnp.bfloat16

    def nrm(k, shape, scale=0.05):
        return jax.random.normal(k, shape, jnp.float32) * scale

    # nn.Embedding(257, 8, padding_idx=0); bf16 so the dominant activation stream is small.
    embed = nrm(ks[0], (257, EMBED), 0.1).at[0].set(0.0).astype(bf16)

    # Conv1d(4, 128, window, stride=window) x2, torch (O, C, K) layout.
    kconv = jax.random.split(ks[1], 4)
    w1 = nrm(kconv[0], (D_MODEL, 4, window), 0.1)
    b1 = nrm(kconv[1], (D_MODEL,), 0.1)
    w2 = nrm(kconv[2], (D_MODEL, 4, window), 0.1)
    b2 = nrm(kconv[3], (D_MODEL,), 0.1)
    # (a) fused block-structured weight for small W: rows k*8+c, cols [cnn | gate]
    blk = jnp.zeros((window, EMBED, 2 * D_MODEL), jnp.float32)
    blk = blk.at[:, 0:4, :D_MODEL].set(w1.transpose(2, 1, 0))            # [k, c, o]
    blk = blk.at[:, 4:8, D_MODEL:].set(w2.transpose(2, 1, 0))
    w_fused = blk.reshape(window * EMBED, 2 * D_MODEL).astype(bf16)
    # (b) channel-split weights for W >= 32: dense K, no zero blocks
    w_cnn = w1.transpose(2, 1, 0).reshape(window * 4, D_MODEL).astype(bf16)
    w_gate = w2.transpose(2, 1, 0).reshape(window * 4, D_MODEL).astype(bf16)
    b_fused = jnp.concatenate([b1, b2]).reshape(1, 2 * D_MODEL)          # f32

    wq, bq, wk, bk, wv, bv = [], [], [], [], [], []
    wo, bo, ln1w, ln1b, l1w, l1b, l2w, l2b, ln2w, ln2b = ([] for _ in range(10))
    lkeys = jax.random.split(ks[2], NUM_LAYERS)
    for l in range(NUM_LAYERS):
        kl = jax.random.split(lkeys[l], 8)
        in_w = nrm(kl[0], (3 * D_MODEL, D_MODEL))       # torch in_proj_weight
        in_b = nrm(kl[1], (3 * D_MODEL,))

        def head_stack(m):                              # (D, D) eff. weight -> (H, D, Dh)
            return m.reshape(D_MODEL, N_HEADS, HEAD_DIM).transpose(1, 0, 2)

        wq.append(head_stack(in_w[:D_MODEL].T).astype(bf16))
        wk.append(head_stack(in_w[D_MODEL:2 * D_MODEL].T).astype(bf16))
        wv.append(head_stack(in_w[2 * D_MODEL:].T).astype(bf16))
        bq.append(in_b[:D_MODEL].reshape(N_HEADS, 1, HEAD_DIM))
        bk.append(in_b[D_MODEL:2 * D_MODEL].reshape(N_HEADS, 1, HEAD_DIM))
        bv.append(in_b[2 * D_MODEL:].reshape(N_HEADS, 1, HEAD_DIM))
        o_w = nrm(kl[2], (D_MODEL, D_MODEL))            # torch out_proj.weight
        wo.append(o_w.T.reshape(N_HEADS, HEAD_DIM, D_MODEL).astype(bf16))
        bo.append(nrm(kl[3], (1, D_MODEL)))
        ln1w.append(jnp.ones((1, D_MODEL), jnp.float32))
        ln1b.append(jnp.zeros((1, D_MODEL), jnp.float32))
        l1w.append(nrm(kl[4], (FF_DIM, D_MODEL)).T.astype(bf16))         # (128, 256)
        l1b.append(nrm(kl[5], (1, FF_DIM)))
        l2w.append(nrm(kl[6], (D_MODEL, FF_DIM)).T.astype(bf16))         # (256, 128)
        l2b.append(nrm(kl[7], (1, D_MODEL)))
        ln2w.append(jnp.ones((1, D_MODEL), jnp.float32))
        ln2b.append(jnp.zeros((1, D_MODEL), jnp.float32))

    kf = jax.random.split(ks[3], 4)
    fc1w = nrm(kf[0], (D_MODEL, D_MODEL)).T.astype(bf16)
    fc1b = nrm(kf[1], (1, D_MODEL))
    fc2w = nrm(kf[2], (1, D_MODEL))                     # torch Linear(128, 1).weight
    fc2b = nrm(kf[3], (1, 1))

    stk = lambda xs: jnp.stack(xs, axis=0)
    tr = (stk(wq), stk(bq), stk(wk), stk(bk), stk(wv), stk(bv), stk(wo), stk(bo),
          stk(ln1w), stk(ln1b), stk(l1w), stk(l1b), stk(l2w), stk(l2b),
          stk(ln2w), stk(ln2b), fc1w, fc1b, fc2w, fc2b)

    return dict(embed=embed, w_fused=w_fused, w_cnn=w_cnn, w_gate=w_gate,
                b_fused=b_fused, tr=tr, window=window)


if __name__ == "__main__":
    key = jax.random.PRNGKey(0)
    kA_tok, kA_par, kB_tok, kB_par = jax.random.split(key, 4)

    # Config A: batch=8, window=16 (W*8 = 128 lanes), T=25 windows; t_tile forced to 8 to
    # exercise multi-tile running-max accumulation + the ragged-last-tile mask (25 % 8 != 0).
    B, L, W = 8, 16 * 25, 16
    tokens = jax.random.randint(kA_tok, (B, L), 0, 257, dtype=jnp.int32)
    params = init_params(kA_par, W)
    out = jax.block_until_ready(maltf_forward(tokens, params, t_tile=8))   # (B, 1) logits
    ref = jax.block_until_ready(reference_forward(tokens, params))
    np.testing.assert_allclose(np.asarray(out, dtype=np.float32),
                               np.asarray(ref, dtype=np.float32), rtol=2e-3, atol=2e-3)

    # Config B: single-sample (B=1) with window=32 -> channel-split conv weights (W >= 32)
    # and the 2-way T-split "parallel" grid axis that keeps v7x's second core busy.
    B, L, W = 1, 32 * 16, 32
    tokens = jax.random.randint(kB_tok, (B, L), 0, 257, dtype=jnp.int32)
    params = init_params(kB_par, W)
    out = jax.block_until_ready(maltf_forward(tokens, params, t_tile=8))
    ref = jax.block_until_ready(reference_forward(tokens, params))
    np.testing.assert_allclose(np.asarray(out, dtype=np.float32),
                               np.asarray(ref, dtype=np.float32), rtol=2e-3, atol=2e-3)

    print("KERNEL_OK")
</pallas_src>

<mosaic_0001>
module attributes {stable_mosaic.version = 11 : i64} {
  func.func @gated_conv_pool_kernel(%arg0: i32, %arg1: i32, %arg2: i32, %arg3: memref<1x8x128xbf16, #tpu.memory_space<vmem>>, %arg4: memref<128x256xbf16, #tpu.memory_space<vmem>>, %arg5: memref<1x256xf32, #tpu.memory_space<vmem>>, %arg6: memref<1x1x1x128xf32, #tpu.memory_space<vmem>>) attributes {dimension_semantics = [#tpu.dimension_semantics<parallel>, #tpu.dimension_semantics<parallel>, #tpu.dimension_semantics<arbitrary>], iteration_bounds = array<i64: 1, 8, 4>, scalar_prefetch = 0 : i64, scratch_operands = 0 : i64, tpu.core_type = #tpu.core_type<tc>, window_params = [{transform_indices = @transform_0, window_bounds = array<i64: 1, 8, 128>}, {pipeline_mode = #tpu.pipeline_mode<synchronous>, transform_indices = @transform_1, window_bounds = array<i64: 128, 256>}, {pipeline_mode = #tpu.pipeline_mode<synchronous>, transform_indices = @transform_2, window_bounds = array<i64: 1, 256>}, {transform_indices = @transform_3, window_bounds = array<i64: 1, 1, 1, 128>}]} {
    %c0_i32 = arith.constant 0 : i32
    %0 = arith.cmpi eq, %arg2, %c0_i32 : i32
    %1 = arith.extui %0 : i1 to i32
    %c0_i32_0 = arith.constant 0 : i32
    %2 = arith.cmpi ne, %1, %c0_i32_0 : i32
    scf.if %2 {
      %cst_10 = arith.constant 0xFF800000 : f32
      %28 = vector.broadcast %cst_10 : f32 to vector<1x128xf32>
      %c0_11 = arith.constant 0 : index
      %c0_12 = arith.constant 0 : index
      %c0_13 = arith.constant 0 : index
      %c0_14 = arith.constant 0 : index
      %29 = vector.load %arg6[%c0_11, %c0_12, %c0_13, %c0_14] : memref<1x1x1x128xf32, #tpu.memory_space<vmem>>, vector<1x1x1x128xf32>
      %30 = vector.shape_cast %29 : vector<1x1x1x128xf32> to vector<1x128xf32>
      %31 = vector.shape_cast %28 : vector<1x128xf32> to vector<1x1x1x128xf32>
      tpu.vector_store %arg6[%c0_11, %c0_12, %c0_13, %c0_14], %31 {strides = array<i32>} : memref<1x1x1x128xf32, #tpu.memory_space<vmem>>, vector<1x1x1x128xf32>,
    } else {
    }
    %c0 = arith.constant 0 : index
    %c0_1 = arith.constant 0 : index
    %c0_2 = arith.constant 0 : index
    %3 = vector.load %arg3[%c0, %c0_1, %c0_2] : memref<1x8x128xbf16, #tpu.memory_space<vmem>>, vector<1x8x128xbf16>
    %4 = vector.shape_cast %3 : vector<1x8x128xbf16> to vector<8x128xbf16>
    %c0_3 = arith.constant 0 : index
    %c0_4 = arith.constant 0 : index
    %5 = vector.load %arg4[%c0_3, %c0_4] : memref<128x256xbf16, #tpu.memory_space<vmem>>, vector<128x256xbf16>
    %cst = arith.constant dense<0.000000e+00> : vector<8x256xf32>
    %6 = tpu.matmul %4, %5, %cst {dimension_numbers = #tpu.dot_dimension_numbers<[1], [0], [0], [1], [0, 0, 1, 1], [], []>} : vector<8x128xbf16>, vector<128x256xbf16>, vector<8x256xf32> -> vector<8x256xf32>
    %c0_5 = arith.constant 0 : index
    %c0_6 = arith.constant 0 : index
    %7 = vector.load %arg5[%c0_5, %c0_6] : memref<1x256xf32, #tpu.memory_space<vmem>>, vector<1x256xf32>
    %8 = vector.broadcast %7 : vector<1x256xf32> to vector<8x256xf32>
    %9 = arith.addf %6, %8 : vector<8x256xf32>
    %10 = vector.extract_strided_slice %9 {offsets = [0, 0], sizes = [8, 128], strides = [1, 1]} : vector<8x256xf32> to vector<8x128xf32>
    %11 = vector.extract_strided_slice %9 {offsets = [0, 128], sizes = [8, 128], strides = [1, 1]} : vector<8x256xf32> to vector<8x128xf32>
    %12 = arith.truncf %11 : vector<8x128xf32> to vector<8x128xbf16>
    %13 = arith.negf %12 : vector<8x128xbf16>
    %14 = math.exp %13 : vector<8x128xbf16>
    %cst_7 = arith.constant 1.000000e+00 : bf16
    %15 = vector.broadcast %cst_7 : bf16 to vector<8x128xbf16>
    %16 = arith.addf %15, %14 : vector<8x128xbf16>
    %17 = arith.divf %15, %16 : vector<8x128xbf16>
    %18 = arith.extf %17 : vector<8x128xbf16> to vector<8x128xf32>
    %19 = arith.mulf %10, %18 : vector<8x128xf32>
    %c4_i32 = arith.constant 4 : i32
    %20 = arith.muli %arg0, %c4_i32 : i32
    %21 = arith.addi %20, %arg2 : i32
    %c3_i32 = arith.constant 3 : i32
    %22 = arith.cmpi eq, %21, %c3_i32 : i32
    %23 = arith.extui %22 : i1 to i32
    %c0_i32_8 = arith.constant 0 : i32
    %24 = arith.cmpi ne, %23, %c0_i32_8 : i32
    scf.if %24 {
      %c8_i32 = arith.constant 8 : i32
      %28 = arith.muli %21, %c8_i32 : i32
      %29 = tpu.iota {dimensions = array<i32: 0>} : vector<8x1xi32>
      %30 = vector.broadcast %28 : i32 to vector<8x1xi32>
      %31 = arith.addi %30, %29 : vector<8x1xi32>
      %c25_i32 = arith.constant 25 : i32
      %32 = vector.broadcast %c25_i32 : i32 to vector<8x1xi32>
      %33 = arith.cmpi slt, %31, %32 : vector<8x1xi32>
      %cst_10 = arith.constant 0xFF800000 : f32
      %34 = vector.shape_cast %33 : vector<8x1xi1> to vector<8x1xi1>
      %35 = vector.broadcast %34 : vector<8x1xi1> to vector<8x128xi1>
      %36 = vector.broadcast %cst_10 : f32 to vector<8x128xf32>
      %37 = arith.select %35, %19, %36 : vector<8x128xi1>, vector<8x128xf32>
      %c0_11 = arith.constant 0 : index
      %c0_12 = arith.constant 0 : index
      %c0_13 = arith.constant 0 : index
      %c0_14 = arith.constant 0 : index
      %38 = vector.load %arg6[%c0_11, %c0_12, %c0_13, %c0_14] : memref<1x1x1x128xf32, #tpu.memory_space<vmem>>, vector<1x1x1x128xf32>
      %39 = vector.shape_cast %38 : vector<1x1x1x128xf32> to vector<1x128xf32>
      %cst_15 = arith.constant dense<0xFF800000> : vector<128xf32>
      %40 = vector.multi_reduction <maximumf>, %37, %cst_15 [0] : vector<8x128xf32> to vector<128xf32>
      %41 = vector.shape_cast %40 : vector<128xf32> to vector<1x128xf32>
      %42 = arith.maximumf %39, %41 : vector<1x128xf32>
      %c0_16 = arith.constant 0 : index
      %c0_17 = arith.constant 0 : index
      %c0_18 = arith.constant 0 : index
      %c0_19 = arith.constant 0 : index
      %43 = vector.load %arg6[%c0_16, %c0_17, %c0_18, %c0_19] : memref<1x1x1x128xf32, #tpu.memory_space<vmem>>, vector<1x1x1x128xf32>
      %44 = vector.shape_cast %43 : vector<1x1x1x128xf32> to vector<1x128xf32>
      %45 = vector.shape_cast %42 : vector<1x128xf32> to vector<1x1x1x128xf32>
      tpu.vector_store %arg6[%c0_16, %c0_17, %c0_18, %c0_19], %45 {strides = array<i32>} : memref<1x1x1x128xf32, #tpu.memory_space<vmem>>, vector<1x1x1x128xf32>,
    } else {
    }
    %true = arith.constant true
    %25 = arith.xori %22, %true : i1
    %26 = arith.extui %25 : i1 to i32
    %c0_i32_9 = arith.constant 0 : i32
    %27 = arith.cmpi ne, %26, %c0_i32_9 : i32
    scf.if %27 {
      %c0_10 = arith.constant 0 : index
      %c0_11 = arith.constant 0 : index
      %c0_12 = arith.constant 0 : index
      %c0_13 = arith.constant 0 : index
      %28 = vector.load %arg6[%c0_10, %c0_11, %c0_12, %c0_13] : memref<1x1x1x128xf32, #tpu.memory_space<vmem>>, vector<1x1x1x128xf32>
      %29 = vector.shape_cast %28 : vector<1x1x1x128xf32> to vector<1x128xf32>
      %cst_14 = arith.constant dense<0xFF800000> : vector<128xf32>
      %30 = vector.multi_reduction <maximumf>, %19, %cst_14 [0] : vector<8x128xf32> to vector<128xf32>
      %31 = vector.shape_cast %30 : vector<128xf32> to vector<1x128xf32>
      %32 = arith.maximumf %29, %31 : vector<1x128xf32>
      %c0_15 = arith.constant 0 : index
      %c0_16 = arith.constant 0 : index
      %c0_17 = arith.constant 0 : index
      %c0_18 = arith.constant 0 : index
      %33 = vector.load %arg6[%c0_15, %c0_16, %c0_17, %c0_18] : memref<1x1x1x128xf32, #tpu.memory_space<vmem>>, vector<1x1x1x128xf32>
      %34 = vector.shape_cast %33 : vector<1x1x1x128xf32> to vector<1x128xf32>
      %35 = vector.shape_cast %32 : vector<1x128xf32> to vector<1x1x1x128xf32>
      tpu.vector_store %arg6[%c0_15, %c0_16, %c0_17, %c0_18], %35 {strides = array<i32>} : memref<1x1x1x128xf32, #tpu.memory_space<vmem>>, vector<1x1x1x128xf32>,
    } else {
    }
    return
  }
  func.func @transform_0(%arg0: i32, %arg1: i32, %arg2: i32) -> (i32, i32, i32) {
    %c4_i32 = arith.constant 4 : i32
    %0 = arith.muli %arg0, %c4_i32 : i32
    %1 = arith.addi %0, %arg2 : i32
    %c0_i32 = arith.constant 0 : i32
    %c0_i32_0 = arith.constant 0 : i32
    return %arg1, %1, %c0_i32 : i32, i32, i32
  }
  func.func @transform_1(%arg0: i32, %arg1: i32, %arg2: i32) -> (i32, i32) {
    %c0_i32 = arith.constant 0 : i32
    %c0_i32_0 = arith.constant 0 : i32
    %c0_i32_1 = arith.constant 0 : i32
    return %c0_i32, %c0_i32_0 : i32, i32
  }
  func.func @transform_2(%arg0: i32, %arg1: i32, %arg2: i32) -> (i32, i32) {
    %c0_i32 = arith.constant 0 : i32
    %c0_i32_0 = arith.constant 0 : i32
    %c0_i32_1 = arith.constant 0 : i32
    return %c0_i32, %c0_i32_0 : i32, i32
  }
  func.func @transform_3(%arg0: i32, %arg1: i32, %arg2: i32) -> (i32, i32, i32, i32) {
    %c0_i32 = arith.constant 0 : i32
    %c0_i32_0 = arith.constant 0 : i32
    %c0_i32_1 = arith.constant 0 : i32
    return %arg0, %arg1, %c0_i32, %c0_i32_0 : i32, i32, i32, i32
  }
}

</mosaic_0001>

<llo_original>
// kernel: tpu_custom_call.1
$region0: #{tpu_custom_call.1}
  #allocation0 [shape = 'u32[]', space=smem, size = 0x4, offset = 0x4, fixed_abs, tag = 'smem constant byte address 0x4 - core index']
  #allocation1 [shape = 'u32[144,128]{1,0:T(1,128)}', space=vmem, size = 0x12000, scoped, tag = 'internal scratch']
  %s0 = inlined_call_operand.vmem [shape: bf16[8,25,128], index: 0, kind: input, shape index: {}]
  %s1 = inlined_call_operand.vmem [shape: bf16[128,256], index: 1, kind: input, shape index: {}]
  %s2 = inlined_call_operand.vmem [shape: f32[1,256], index: 2, kind: input, shape index: {}]
  %s3 = inlined_call_operand.hbm [shape: f32[1,8,1,128], index: 3, kind: output, shape index: {}]
  %s4 = sld [smem:[#allocation0]]
  $region57: #{tpu_custom_call.1} parent=0
    _
  %s6 = ssub.s32 1, %s4
  %s7 = scalar_select 0, %s6, %s4
  $region1: #{tpu_custom_call.1} parent=0
    #allocation2 [shape = 'u8[1024]{0}', space=vmem, size = 0x400, scoped, tag = 'output window, operand 0']
    #allocation3 [shape = 's32[2]{0}', space=sflag, size = 0x8, scoped, tag = 'scoped memory for tpu_custom_call.1']
    %8 = vsyncpa [#allocation3], 0
    %s9 = scalar_lea.sflag [#allocation3], 1
    %10 = vsyncpa %s9, 0
    loop: start=0, step=1, limit=34
    $region2: #{tpu_custom_call.1} parent=1 // loop_pre_header
      _
    $region3: #{tpu_custom_call.1} parent=1 // loop_header
      %s12 = sphi 0, %s16
      %p13 = scmp.ge.s32.totalorder %s12, 34
      %s19 = sphi 0, %s38
      %s20 = sphi 0, %s34
      %s21 = sphi 0, %s30
      %s22 = sphi 0, %s19
      %s23 = sphi 0, %s20
      %s24 = sphi 0, %s21
      %s25 = sphi 0, %s22
      %s26 = sphi 0, %s23
      %s27 = sphi 0, %s24
      %s47 = sphi 0, %s49
      %s50 = sphi 0, %s47
      %s51 = sphi 0, %s50
      %s67 = sphi 0, %s51
      %s71 = sphi 0, %s71
      %s73 = sphi 0, %s71
      %s74 = sphi 0, %s73
      %s88 = sphi 0, %s74
      %s92 = sphi 0, %s92
      %s94 = sphi 0, %s92
      %s95 = sphi 0, %s94
      %s109 = sphi 0, %s95
      %s117 = sphi 0, %s119
      %s120 = sphi 0, %s117
      %s121 = sphi 0, %s120
      %s137 = sphi 0, %s121
    $region4: #{tpu_custom_call.1} parent=1 // loop_header_branch
      %15 = sbr.rel (%p13) target = $region8
    $region5: #{tpu_custom_call.1} parent=1 // loop_body
      %s17 = ssub.s32 %s12, 1
      %s18 = ssub.s32 %s12, 2
      %s28 = sadd.s32 1, %s21
      %p29 = scmp.ge.s32.totalorder %s28, 4
      %s30 = scalar_select %p29, 0, %s28
      %s31 = sadd.s32 1, %s20
      %s32 = scalar_select %p29, %s31, %s20
      %p33 = scmp.ge.s32.totalorder %s32, 8
      %s34 = scalar_select %p33, 0, %s32
      %s35 = sadd.s32 1, %s19
      %s36 = scalar_select %p33, %s35, %s19
      %p37 = scmp.ge.s32.totalorder %s36, 1
      %s38 = scalar_select %p37, 0, %s36
      %s39 = smul.u32 %s19, 4
      %s40 = sadd.s32 %s39, %s21
      %s41 = smul.u32 %s38, 4
      %s42 = sadd.s32 %s41, %s30
      %s43 = ssub.s32 %s20, %s34
      %s44 = ssub.s32 %s40, %s42
      %s45 = sor.u32 %s43, %s44
      %p46 = scmp.eq.s32.totalorder %s45, 0
      %s48 = sadd.s32 %s47, 1
      %s49 = scalar_select %p46, %s47, %s48
      %p52 = pneg %p46
      %p53 = scmp.eq.s32.totalorder %s12, 31
      %p54 = por %p52, %p53
      %p55 = scmp.ne.s32.totalorder %s47, %s50
      %p56 = scmp.eq.s32.totalorder %s12, 0
      %p57 = por %p55, %p56
      %p58 = scmp.ne.s32.totalorder %s47, %s50
      %p59 = scmp.eq.s32.totalorder %s17, 31
      %p60 = por %p58, %p59
      %p61 = scmp.ne.s32.totalorder %s50, %s51
      %p62 = scmp.eq.s32.totalorder %s17, 0
      %p63 = por %p61, %p62
      %p64 = scmp.ne.s32.totalorder %s50, %s51
      %p65 = scmp.eq.s32.totalorder %s18, 31
      %p66 = por %p64, %p65
      %p68 = scmp.ne.s32.totalorder %s51, %s67
      %p69 = scmp.eq.s32.totalorder %s18, 0
      %p70 = por %p68, %p69
      %s72 = sadd.s32 %s71, 1
      %p75 = scmp.eq.s32.totalorder %s12, 31
      %p76 = scmp.ne.s32.totalorder %s71, %s73
      %p77 = scmp.eq.s32.totalorder %s12, 0
      %p78 = por %p76, %p77
      %p79 = scmp.ne.s32.totalorder %s71, %s73
      %p80 = scmp.eq.s32.totalorder %s17, 31
      %p81 = por %p79, %p80
      %p82 = scmp.ne.s32.totalorder %s73, %s74
      %p83 = scmp.eq.s32.totalorder %s17, 0
      %p84 = por %p82, %p83
      %p85 = scmp.ne.s32.totalorder %s73, %s74
      %p86 = scmp.eq.s32.totalorder %s18, 31
      %p87 = por %p85, %p86
      %p89 = scmp.ne.s32.totalorder %s74, %s88
      %p90 = scmp.eq.s32.totalorder %s18, 0
      %p91 = por %p89, %p90
      %s93 = sadd.s32 %s92, 1
      %p96 = scmp.eq.s32.totalorder %s12, 31
      %p97 = scmp.ne.s32.totalorder %s92, %s94
      %p98 = scmp.eq.s32.totalorder %s12, 0
      %p99 = por %p97, %p98
      %p100 = scmp.ne.s32.totalorder %s92, %s94
      %p101 = scmp.eq.s32.totalorder %s17, 31
      %p102 = por %p100, %p101
      %p103 = scmp.ne.s32.totalorder %s94, %s95
      %p104 = scmp.eq.s32.totalorder %s17, 0
      %p105 = por %p103, %p104
      %p106 = scmp.ne.s32.totalorder %s94, %s95
      %p107 = scmp.eq.s32.totalorder %s18, 31
      %p108 = por %p106, %p107
      %p110 = scmp.ne.s32.totalorder %s95, %s109
      %p111 = scmp.eq.s32.totalorder %s18, 0
      %p112 = por %p110, %p111
      %s113 = ssub.s32 %s19, %s38
      %s114 = ssub.s32 %s20, %s34
      %s115 = sor.u32 %s113, %s114
      %p116 = scmp.eq.s32.totalorder %s115, 0
      %s118 = sadd.s32 %s117, 1
      %s119 = scalar_select %p116, %s117, %s118
      %p122 = pneg %p116
      %p123 = scmp.eq.s32.totalorder %s12, 31
      %p124 = por %p122, %p123
      %p125 = scmp.ne.s32.totalorder %s117, %s120
      %p126 = scmp.eq.s32.totalorder %s12, 0
      %p127 = por %p125, %p126
      %p128 = scmp.ne.s32.totalorder %s117, %s120
      %p129 = scmp.eq.s32.totalorder %s17, 31
      %p130 = por %p128, %p129
      %p131 = scmp.ne.s32.totalorder %s120, %s121
      %p132 = scmp.eq.s32.totalorder %s17, 0
      %p133 = por %p131, %p132
      %p134 = scmp.ne.s32.totalorder %s120, %s121
      %p135 = scmp.eq.s32.totalorder %s18, 31
      %p136 = por %p134, %p135
      %p138 = scmp.ne.s32.totalorder %s121, %s137
      %p139 = scmp.eq.s32.totalorder %s18, 0
      %p140 = por %p138, %p139
      %p141 = scmp.le.s32.totalorder 1, %s12
      %p142 = scmp.lt.s32.totalorder %s12, 33
      %p143 = pnand %p141, %p142
      %p144 = pneg %p143
      // Predicated region
      $region9: #{tpu_custom_call.1} parent=5 // pred_check
        _
      $region10: #{tpu_custom_call.1} parent=5 // pred_check_branch
        %146 = sbr.rel (%p143) target = $region12
      $region11: #{tpu_custom_call.1} parent=5 // pred_region
        %s147 = ssub.s32 %s12, 1
        // Predicated region
        $region13: #{tpu_custom_call.1} parent=11 // pred_check
          %p148 = pneg %p84
        $region14: #{tpu_custom_call.1} parent=11 // pred_check_branch
          %150 = sbr.rel (%p148) target = $region16
        $region15: #{tpu_custom_call.1} parent=11 // pred_region
          _
        $region16: #{tpu_custom_call.1} parent=11 // pred_fallthru
          _
        // Predicated region
        $region17: #{tpu_custom_call.1} parent=11 // pred_check
          %p151 = pneg %p105
        $region18: #{tpu_custom_call.1} parent=11 // pred_check_branch
          %153 = sbr.rel (%p151) target = $region20
        $region19: #{tpu_custom_call.1} parent=11 // pred_region
          _
        $region20: #{tpu_custom_call.1} parent=11 // pred_fallthru
          _
      $region12: #{tpu_custom_call.1} parent=5 // pred_fallthru
        _
      %p154 = scmp.lt.s32.totalorder %s12, 32
      // Predicated region
      $region21: #{tpu_custom_call.1} parent=5 // pred_check
        %p155 = pneg %p154
      $region22: #{tpu_custom_call.1} parent=5 // pred_check_branch
        %157 = sbr.rel (%p155) target = $region24
      $region23: #{tpu_custom_call.1} parent=5 // pred_region
        // Predicated region
        $region25: #{tpu_custom_call.1} parent=23 // pred_check
          %p158 = pneg %p57
        $region26: #{tpu_custom_call.1} parent=23 // pred_check_branch
          %160 = sbr.rel (%p158) target = $region28
        $region27: #{tpu_custom_call.1} parent=23 // pred_region
          %s161 = smul.u32 %s19, 4
          %s162 = sadd.s32 %s161, %s21
          %p163 = scmp.lt.s32.totalorder %s20, 7
          %s164 = scalar_select %p163, %s20, 7
          %p165 = scmp.lt.s32.totalorder %s162, 3
          %s166 = scalar_select %p165, %s162, 3
          %s167 = smul.addr %s164, 4
          %s168 = sadd.s32 %s166, %s167
          %s169 = smul.addr %s168, 4
          %s170 = scalar_lea.vmem %s0, %s169
          %s171 = smul.u32 %s19, 4
          %s172 = sadd.s32 %s171, %s21
        $region28: #{tpu_custom_call.1} parent=23 // pred_fallthru
          _
      $region24: #{tpu_custom_call.1} parent=5 // pred_fallthru
        _
      %p173 = scmp.le.s32.totalorder 1, %s12
      %p174 = scmp.lt.s32.totalorder %s12, 33
      %p175 = pnand %p173, %p174
      %p176 = pneg %p175
      // Predicated region
      $region29: #{tpu_custom_call.1} parent=5 // pred_check
        _
      $region30: #{tpu_custom_call.1} parent=5 // pred_check_branch
        %178 = sbr.rel (%p175) target = $region32
      $region31: #{tpu_custom_call.1} parent=5 // pred_region
        %s179 = ssub.s32 %s12, 1
        %s180 = smul.u32 %s22, 4
        %s181 = sadd.s32 %s180, %s24
        %p182 = scmp.lt.s32.totalorder %s23, 7
        %s183 = scalar_select %p182, %s23, 7
        %p184 = scmp.lt.s32.totalorder %s181, 3
        %s185 = scalar_select %p184, %s181, 3
        %s186 = smul.addr %s183, 4
        %s187 = sadd.s32 %s185, %s186
        %s188 = smul.addr %s187, 4
        %s189 = scalar_lea.vmem %s0, %s188
        %p190 = pneg %p63
        %p191 = pneg %p60
        %p192 = pneg %p84
        %p193 = pneg %p81
        %p194 = pneg %p105
        %p195 = pneg %p102
        %p196 = pneg %p133
        %p197 = pneg %p130
        %s198 = sand.u32 %s120, 1
        %s199 = scalar_lea.sflag [#allocation3], %s198
        %s200 = sand.u32 %s120, 1
        %s201 = scalar_lea.vmem [#allocation2], %s200
        %s202 = smul.u32 %s22, 4
        %s203 = sadd.s32 %s202, %s24
        %p204 = scmp.lt.s32.totalorder %s23, 7
        %s205 = scalar_select %p204, %s23, 7
        %p206 = scmp.lt.s32.totalorder %s203, 3
        %s207 = scalar_select %p206, %s203, 3
        %s208 = smul.addr %s205, 4
        %s209 = sadd.s32 %s207, %s208
        %s210 = smul.addr %s209, 4
        %s211 = scalar_lea.vmem %s0, %s210
        %s212 = smul.u32 %s22, 4
        %s213 = sadd.s32 %s212, %s24
        %p216 = scmp.eq.s32.totalorder %s24, 0
        // Predicated region
        $region33: #{tpu_custom_call.1} parent=31 // pred_check
          %p217 = pneg %p216
        $region34: #{tpu_custom_call.1} parent=31 // pred_check_branch
          %219 = sbr.rel (%p217) target = $region36
        $region35: #{tpu_custom_call.1} parent=31 // pred_region
          %220 = vst [vmem:[%s201] sm:$0x1] -inf
        $region36: #{tpu_custom_call.1} parent=31 // pred_fallthru
          _
        %v221 = vld [vmem:[%s211] sm:$0xf]
        %v222 = vld [vmem:[%s1] sm:$0xff]
        %v223 = vld [vmem:[%s1 + $0x8] sm:$0xff]
        %v224 = vld [vmem:[%s1 + $0x10] sm:$0xff]
        %v225 = vld [vmem:[%s1 + $0x18] sm:$0xff]
        %v226 = vld [vmem:[%s1 + $0x20] sm:$0xff]
        %v227 = vld [vmem:[%s1 + $0x28] sm:$0xff]
        %v228 = vld [vmem:[%s1 + $0x30] sm:$0xff]
        %v229 = vld [vmem:[%s1 + $0x38] sm:$0xff]
        %v230 = vld [vmem:[%s1 + $0x40] sm:$0xff]
        %v231 = vld [vmem:[%s1 + $0x48] sm:$0xff]
        %v232 = vld [vmem:[%s1 + $0x50] sm:$0xff]
        %v233 = vld [vmem:[%s1 + $0x58] sm:$0xff]
        %v234 = vld [vmem:[%s1 + $0x60] sm:$0xff]
        %v235 = vld [vmem:[%s1 + $0x68] sm:$0xff]
        %v236 = vld [vmem:[%s1 + $0x70] sm:$0xff]
        %v237 = vld [vmem:[%s1 + $0x78] sm:$0xff]
        %v238 = vld [vmem:[%s2] sm:$0x3]
        %v240 = vlaneseq
        %v241 = vshrl.u32 %v240, 7
        %v242 = vsub.s32 0, %v241
        %v243 = vrot.slane %v238, %v242
        %v244 = vlaneseq
        %v245 = vshrl.u32 %v244, 7
        %v246 = vsub.s32 1, %v245
        %v247 = vrot.slane %v238, %v246
        %v266 = vunpack.c.l.b16 %v222
        %v267 = vunpack.c.h.b16 %v222
        %v268 = vunpack.c.l.b16 %v223
        %v269 = vunpack.c.h.b16 %v223
        %v270 = vunpack.c.l.b16 %v224
        %v271 = vunpack.c.h.b16 %v224
        %v272 = vunpack.c.l.b16 %v225
        %v273 = vunpack.c.h.b16 %v225
        %v274 = vunpack.c.l.b16 %v226
        %v275 = vunpack.c.h.b16 %v226
        %v276 = vunpack.c.l.b16 %v227
        %v277 = vunpack.c.h.b16 %v227
        %v278 = vunpack.c.l.b16 %v228
        %v279 = vunpack.c.h.b16 %v228
        %v280 = vunpack.c.l.b16 %v229
        %v281 = vunpack.c.h.b16 %v229
        %v282 = vunpack.c.l.b16 %v230
        %v283 = vunpack.c.h.b16 %v230
        %v284 = vunpack.c.l.b16 %v231
        %v285 = vunpack.c.h.b16 %v231
        %v286 = vunpack.c.l.b16 %v232
        %v287 = vunpack.c.h.b16 %v232
        %v288 = vunpack.c.l.b16 %v233
        %v289 = vunpack.c.h.b16 %v233
        %v290 = vunpack.c.l.b16 %v234
        %v291 = vunpack.c.h.b16 %v234
        %v292 = vunpack.c.l.b16 %v235
        %v293 = vunpack.c.h.b16 %v235
        %v294 = vunpack.c.l.b16 %v236
        %v295 = vunpack.c.h.b16 %v236
        %v296 = vunpack.c.l.b16 %v237
        %v297 = vunpack.c.h.b16 %v237
        %v298 = vpack.c.b16 %v268, %v266
        %v299 = vpack.c.b16 %v269, %v267
        %v300 = vpack.c.b16 %v272, %v270
        %v301 = vpack.c.b16 %v273, %v271
        %v302 = vpack.c.b16 %v276, %v274
        %v303 = vpack.c.b16 %v277, %v275
        %v304 = vpack.c.b16 %v280, %v278
        %v305 = vpack.c.b16 %v281, %v279
        %v306 = vpack.c.b16 %v284, %v282
        %v307 = vpack.c.b16 %v285, %v283
        %v308 = vpack.c.b16 %v288, %v286
        %v309 = vpack.c.b16 %v289, %v287
        %v310 = vpack.c.b16 %v292, %v290
        %v311 = vpack.c.b16 %v293, %v291
        %v312 = vpack.c.b16 %v296, %v294
        %v313 = vpack.c.b16 %v297, %v295
        %330 = vmatprep.subr.bf16.mxu0 %v299
        %331 = vmatpush1.bf16.msra.mxu0 %v298
        %332 = vmatprep.subr.bf16.mxu0 %v301
        %333 = vmatpush1.bf16.msra.mxu0 %v300
        %334 = vmatprep.subr.bf16.mxu0 %v303
        %335 = vmatpush1.bf16.msra.mxu0 %v302
        %336 = vmatprep.subr.bf16.mxu0 %v305
        %337 = vmatpush1.bf16.msra.mxu0 %v304
        %338 = vmatprep.subr.bf16.mxu0 %v307
        %339 = vmatpush1.bf16.msra.mxu0 %v306
        %340 = vmatprep.subr.bf16.mxu0 %v309
        %341 = vmatpush1.bf16.msra.mxu0 %v308
        %342 = vmatprep.subr.bf16.mxu0 %v311
        %343 = vmatpush1.bf16.msra.mxu0 %v310
        %344 = vmatprep.subr.bf16.mxu0 %v313
        %345 = vmatpush1.bf16.msra.mxu0 %v312
        %346 = vmatprep.subr.bf16.mxu0 0
        %347 = vmatpush1.bf16.msra.mxu0 0
        %348 = vmatprep.subr.bf16.mxu0 0
        %349 = vmatpush1.bf16.msra.mxu0 0
        %350 = vmatprep.subr.bf16.mxu0 0
        %351 = vmatpush1.bf16.msra.mxu0 0
        %352 = vmatprep.subr.bf16.mxu0 0
        %353 = vmatpush1.bf16.msra.mxu0 0
        %354 = vmatprep.subr.bf16.mxu0 0
        %355 = vmatpush1.bf16.msra.mxu0 0
        %356 = vmatprep.subr.bf16.mxu0 0
        %357 = vmatpush1.bf16.msra.mxu0 0
        %358 = vmatprep.subr.bf16.mxu0 0
        %359 = vmatpush1.bf16.msra.mxu0 0
        %360 = vmatprep.subr.bf16.mxu0 0
        %361 = vmatpush1.bf16.msra.mxu0 0
        %362 = vmatprep.mubr.bf16.mxu0 0
        %363 = vmatmul.mubr.bf16.gmra.mrb[0].mxu0 %v221
        %v364 = vpop.f32.mrb[0].mxu0
        %v365 = vadd.f32 %v243, %v364
        %v366 = vpop.f32.mrb[0].mxu0
        %v367 = vadd.f32 %v247, %v366
        %v368 = vpop.f32.mrb[0].mxu0
        %v369 = vpop.f32.mrb[0].mxu0
        %370 = vdwg.mxu0
        %v371 = vpack.c.bf16 %v367, %v367
        %v372 = vxor.u32 %v371, 2147516416
        %v374 = vmul.bf16 %v372, 1069105081
        %v375 = vpow.bf16.pop %v374
        %v376 = vadd.bf16 %v375, 1065369472
        %v377 = vrcp.bf16.pop %v376
        %v378 = vmul.bf16 1065369472, %v377
        %v379 = vunpack.c.l.bf16 %v378
        %v380 = vmul.f32 %v365, %v379
        %s381 = smul.u32 %s22, 4
        %s382 = sadd.s32 %s381, %s24
        %p383 = scmp.eq.s32.totalorder %s382, 3
        // Predicated region
        $region37: #{tpu_custom_call.1} parent=31 // pred_check
          %p384 = pneg %p383
        $region38: #{tpu_custom_call.1} parent=31 // pred_check_branch
          %386 = sbr.rel (%p384) target = $region40
        $region39: #{tpu_custom_call.1} parent=31 // pred_region
          %s387 = smul.u32 %s382, 8
          %v388 = vlaneseq
          %v389 = vshrl.u32 %v388, 7
          %v390 = vstv %s387
          %v391 = vadd.s32 %v390, %v389
          %vm392 = vcmp.lt.s32.totalorder %v391, 25
          %v393 = vsel %vm392, 1, 0
          %vm394 = vcmp.eq.s32.totalorder %v393, 1
          %v395 = vsel %vm394, %v380, -inf
          %v396 = vld [vmem:[%s201] sm:$0x1]
          %v397 = vrot.slane %v395, 4
          %v398 = vmax.f32 %v395, %v397
          %v399 = vrot.slane %v398, 2
          %v400 = vmax.f32 %v398, %v399
          %v401 = vrot.slane %v400, 1
          %v402 = vmax.f32 %v400, %v401
          %v403 = vmax.f32 %v396, %v402
          %404 = vst [vmem:[%s201] sm:$0x1] %v403
        $region40: #{tpu_custom_call.1} parent=31 // pred_fallthru
          _
        %p405 = scmp.ne.s32.totalorder %s382, 3
        // Predicated region
        $region41: #{tpu_custom_call.1} parent=31 // pred_check
          %p406 = pneg %p405
        $region42: #{tpu_custom_call.1} parent=31 // pred_check_branch
          %408 = sbr.rel (%p406) target = $region44
        $region43: #{tpu_custom_call.1} parent=31 // pred_region
          %v409 = vld [vmem:[%s201] sm:$0x1]
          %v410 = vrot.slane %v380, 4
          %v411 = vmax.f32 %v380, %v410
          %v412 = vrot.slane %v411, 2
          %v413 = vmax.f32 %v411, %v412
          %v414 = vrot.slane %v413, 1
          %v415 = vmax.f32 %v413, %v414
          %v416 = vmax.f32 %v409, %v415
          %417 = vst [vmem:[%s201] sm:$0x1] %v416
        $region44: #{tpu_custom_call.1} parent=31 // pred_fallthru
          _
        %s418 = sand.u32 %s120, 1
        %s419 = scalar_lea.sflag [#allocation3], %s418
        %s420 = sand.u32 %s120, 1
        %s421 = scalar_lea.vmem [#allocation2], %s420
        // Predicated region
        $region45: #{tpu_custom_call.1} parent=31 // pred_check
          %p422 = pneg %p130
        $region46: #{tpu_custom_call.1} parent=31 // pred_check_branch
          %424 = sbr.rel (%p422) target = $region48
        $region47: #{tpu_custom_call.1} parent=31 // pred_region
          %s426 = ssub.s32 16, 16
          %427 = vsyncadd %s419, %s426
          %s428 = smul.addr %s22, 8
          %s429 = sadd.s32 %s23, %s428
          %s430 = smul.addr %s429, 16
          %s431 = scalar_lea.hbm %s3, %s430
          %s433 = sshll.u32 %s421, 4
          %s434 = int_to_ptr.vmem [resolvable:$true] %s433
          %436 = dma.vmem_to_hbm [thread:$0]  %s434, 16, %s431, %s419
        $region48: #{tpu_custom_call.1} parent=31 // pred_fallthru
          _
      $region32: #{tpu_custom_call.1} parent=5 // pred_fallthru
        _
      %p437 = scmp.le.s32.totalorder 2, %s12
      // Predicated region
      $region49: #{tpu_custom_call.1} parent=5 // pred_check
        %p438 = pneg %p437
      $region50: #{tpu_custom_call.1} parent=5 // pred_check_branch
        %440 = sbr.rel (%p438) target = $region52
      $region51: #{tpu_custom_call.1} parent=5 // pred_region
        %s441 = ssub.s32 %s12, 2
        // Predicated region
        $region53: #{tpu_custom_call.1} parent=51 // pred_check
          %p442 = pneg %p136
        $region54: #{tpu_custom_call.1} parent=51 // pred_check_branch
          %444 = sbr.rel (%p442) target = $region56
        $region55: #{tpu_custom_call.1} parent=51 // pred_region
          %s445 = sand.u32 %s121, 1
          %s446 = scalar_lea.sflag [#allocation3], %s445
          %s447 = sand.u32 %s121, 1
          %s448 = scalar_lea.vmem [#allocation2], %s447
          %449 = dma.done %s446, 16
        $region56: #{tpu_custom_call.1} parent=51 // pred_fallthru
          _
      $region52: #{tpu_custom_call.1} parent=5 // pred_fallthru
        _
    $region6: #{tpu_custom_call.1} parent=1 // loop_footer
      %s16 = sadd.s32 1, %s12
    $region7: #{tpu_custom_call.1} parent=1 // loop_footer_branch
      %11 = sbr.rel target = $region3
    $region8: #{tpu_custom_call.1} parent=1 // loop_exit
      _
    %450 = vsyncpa [#allocation3], 1
    %s451 = scalar_lea.sflag [#allocation3], 1
    %452 = vsyncpa %s451, 1

</llo_original>
